<compile_context>
chip_gen: v7x
topology: tpu7x:2x2x1
jax: 0.10.0
libtpu: 0.0.40
codegen_flags: <defaults>
</compile_context>

<pallas_src>
import math

import jax
import jax.numpy as jnp
from jax.experimental import pallas as pl
from jax.experimental.pallas import tpu as pltpu


def _copy_kernel(x_ref, o_ref):
    # Pure streaming copy: flatten has no arithmetic, only data movement.
    o_ref[...] = x_ref[...]


# Candidate lane widths (large multiples of 128 first -> lane-dense stores).
_LANE_WIDTHS = (8192, 4096, 2048, 1024, 512, 256, 128)
# Per-block VMEM budget. With double-buffered input + output this is
# 4 * _MAX_BLOCK_BYTES = 16 MiB total, safely under every generation's scoped
# VMEM limit (v5e 16 MiB default would be tight, so we also raise the limit).
_MAX_BLOCK_BYTES = 4 * 1024 * 1024
_VMEM_LIMIT_BYTES = 32 * 1024 * 1024


def _pick_block_rows(rows: int, cap: int) -> int:
    """Largest divisor of `rows` that is <= cap, preferring multiples of 8."""
    cap = max(1, min(rows, cap))
    # Prefer multiples of 8 (clean sublane tiling, unmasked stores).
    start = cap - (cap % 8)
    for c in range(start, 0, -8):
        if rows % c == 0:
            return c
    if rows <= cap:
        return rows
    for c in range(cap, 0, -1):
        if rows % c == 0:
            return c
    return 1


def flatten_forward(x: jax.Array) -> jax.Array:
    """Pallas equivalent of torch `x.view(x.size(0), -1)` (contiguous input)."""
    n = x.shape[0]
    d = math.prod(x.shape[1:]) if x.ndim > 1 else 1
    total = n * d
    itemsize = jnp.dtype(x.dtype).itemsize

    # Metadata-only view (identical element order to torch .view on contiguous
    # NCHW data). This is the part that actually implements "flatten".
    x2 = x.reshape(n, d)

    compiler_params = pltpu.CompilerParams(
        dimension_semantics=("parallel",),
        vmem_limit_bytes=_VMEM_LIMIT_BYTES,
    )

    if total % 128 == 0:
        # Re-view the contiguous buffer as a lane-dense slab (rows, cols) with a
        # wide last dim; each grid block is a fully contiguous chunk of memory.
        cols = next(c for c in _LANE_WIDTHS if total % c == 0)
        rows = total // cols
        slab = x2.reshape(rows, cols)

        target_rows = max(1, _MAX_BLOCK_BYTES // (cols * itemsize))
        block_rows = _pick_block_rows(rows, target_rows)
        grid = (rows // block_rows,)

        out = pl.pallas_call(
            _copy_kernel,
            out_shape=jax.ShapeDtypeStruct((rows, cols), x.dtype),
            grid_spec=pltpu.PrefetchScalarGridSpec(
                num_scalar_prefetch=0,
                grid=grid,
                in_specs=[pl.BlockSpec((block_rows, cols), lambda i: (i, 0))],
                out_specs=pl.BlockSpec((block_rows, cols), lambda i: (i, 0)),
            ),
            compiler_params=compiler_params,
        )(slab)
        return out.reshape(n, d)

    # Fallback: feature dim not a multiple of 128. Use full-extent last dim
    # (legal for any width) and tile over the batch axis, capped by the same
    # VMEM budget so a large D cannot blow past the scoped limit.
    target_rows = max(1, _MAX_BLOCK_BYTES // max(1, d * itemsize))
    block_rows = _pick_block_rows(n, target_rows)
    grid = (n // block_rows,)

    out = pl.pallas_call(
        _copy_kernel,
        out_shape=jax.ShapeDtypeStruct((n, d), x.dtype),
        grid_spec=pltpu.PrefetchScalarGridSpec(
            num_scalar_prefetch=0,
            grid=grid,
            in_specs=[pl.BlockSpec((block_rows, d), lambda i: (i, 0))],
            out_specs=pl.BlockSpec((block_rows, d), lambda i: (i, 0)),
        ),
        compiler_params=compiler_params,
    )(x2)
    return out


if __name__ == "__main__":
    key = jax.random.PRNGKey(0)
    # Small NCHW shape consistent with the module's use after conv stacks.
    x = jax.random.normal(key, (2, 4, 16, 16), dtype=jnp.float32)

    y = flatten_forward(x)
    y = jax.block_until_ready(y)

    # Reference: plain JAX reshape (same semantics as torch .view(N, -1)).
    y_ref = x.reshape(x.shape[0], -1)

    assert y.shape == (2, 4 * 16 * 16), y.shape
    assert y.dtype == x.dtype
    assert jnp.array_equal(y, y_ref)

    print("KERNEL_OK")
</pallas_src>

<mosaic_0001>
module attributes {stable_mosaic.version = 11 : i64} {
  func.func @_copy_kernel(%arg0: i32, %arg1: memref<1x2048xf32, #tpu.memory_space<vmem>>, %arg2: memref<1x2048xf32, #tpu.memory_space<vmem>>) attributes {dimension_semantics = [#tpu.dimension_semantics<parallel>], iteration_bounds = array<i64: 1>, scalar_prefetch = 0 : i64, scratch_operands = 0 : i64, tpu.core_type = #tpu.core_type<tc>, window_params = [{transform_indices = @transform_0, window_bounds = array<i64: 1, 2048>}, {transform_indices = @transform_1, window_bounds = array<i64: 1, 2048>}]} {
    %c0 = arith.constant 0 : index
    %c0_0 = arith.constant 0 : index
    %0 = vector.load %arg1[%c0, %c0_0] : memref<1x2048xf32, #tpu.memory_space<vmem>>, vector<1x2048xf32>
    %c0_1 = arith.constant 0 : index
    %c0_2 = arith.constant 0 : index
    %1 = vector.load %arg2[%c0_1, %c0_2] : memref<1x2048xf32, #tpu.memory_space<vmem>>, vector<1x2048xf32>
    tpu.vector_store %arg2[%c0_1, %c0_2], %0 {strides = array<i32>} : memref<1x2048xf32, #tpu.memory_space<vmem>>, vector<1x2048xf32>,
    return
  }
  func.func @transform_0(%arg0: i32) -> (i32, i32) {
    %c0_i32 = arith.constant 0 : i32
    %c0_i32_0 = arith.constant 0 : i32
    return %arg0, %c0_i32 : i32, i32
  }
  func.func @transform_1(%arg0: i32) -> (i32, i32) {
    %c0_i32 = arith.constant 0 : i32
    %c0_i32_0 = arith.constant 0 : i32
    return %arg0, %c0_i32 : i32, i32
  }
}

</mosaic_0001>

<llo_original>
// kernel: tpu_custom_call.1
$region0: #{tpu_custom_call.1}
  #allocation0 [shape = 'u32[]', space=smem, size = 0x4, offset = 0x4, fixed_abs, tag = 'smem constant byte address 0x4 - core index']
  #allocation1 [shape = 'u32[144,128]{1,0:T(1,128)}', space=vmem, size = 0x12000, scoped, tag = 'internal scratch']
  %s0 = inlined_call_operand.hbm [shape: f32[1,2048], index: 0, kind: input, shape index: {}]
  %s1 = inlined_call_operand.hbm [shape: f32[1,2048], index: 1, kind: output, shape index: {}]
  %s2 = sld [smem:[#allocation0]]
  $region18: #{tpu_custom_call.1} parent=0
    _
  %s4 = ssub.s32 1, %s2
  %s5 = scalar_select 0, %s4, %s2
  $region1: #{tpu_custom_call.1} parent=0
    #allocation2 [shape = 'u8[8192]{0}', space=vmem, size = 0x2000, scoped, tag = 'input window, operand 0, single buffered']
    #allocation3 [shape = 's32[1]{0}', space=sflag, size = 0x4, scoped, tag = 'scoped memory for tpu_custom_call.1']
    #allocation4 [shape = 's32[1]{0}', space=sflag, size = 0x4, scoped, tag = 'scoped memory for tpu_custom_call.1']
    #allocation5 [shape = 'u8[8192]{0}', space=vmem, size = 0x2000, scoped, tag = 'output window, operand 0, single buffered']
    %6 = vsyncpa [#allocation3], 0
    %7 = vsyncpa [#allocation4], 0
    // Predicated region
    $region2: #{tpu_custom_call.1} parent=1 // pred_check
      _
    $region3: #{tpu_custom_call.1} parent=1 // pred_check_branch
      %9 = sbr.rel (0) target = $region5
    $region4: #{tpu_custom_call.1} parent=1 // pred_region
      %s11 = ssub.s32 256, 256
      %12 = vsyncadd [#allocation3], %s11
      %s14 = sshll.u32 [#allocation2], 4
      %s15 = int_to_ptr.vmem [resolvable:$true] %s14
      %17 = dma.hbm_to_vmem [thread:$0]  %s0, 256, %s15, [#allocation3]
    $region5: #{tpu_custom_call.1} parent=1 // pred_fallthru
      _
    // Predicated region
    $region6: #{tpu_custom_call.1} parent=1 // pred_check
      _
    $region7: #{tpu_custom_call.1} parent=1 // pred_check_branch
      %19 = sbr.rel (0) target = $region9
    $region8: #{tpu_custom_call.1} parent=1 // pred_region
      %20 = dma.done [#allocation3], 256
    $region9: #{tpu_custom_call.1} parent=1 // pred_fallthru
      _
    %v21 = vld [vmem:[#allocation2] sm:$0xff]
    %v22 = vld [vmem:[#allocation2 + $0x8] sm:$0xff]
    %23 = vst [vmem:[#allocation5] sm:$0xff] %v21
    %24 = vst [vmem:[#allocation5 + $0x8] sm:$0xff] %v22
    // Predicated region
    $region10: #{tpu_custom_call.1} parent=1 // pred_check
      _
    $region11: #{tpu_custom_call.1} parent=1 // pred_check_branch
      %26 = sbr.rel (0) target = $region13
    $region12: #{tpu_custom_call.1} parent=1 // pred_region
      %s28 = ssub.s32 256, 256
      %29 = vsyncadd [#allocation4], %s28
      %s31 = sshll.u32 [#allocation5], 4
      %s32 = int_to_ptr.vmem [resolvable:$true] %s31
      %34 = dma.vmem_to_hbm [thread:$0]  %s32, 256, %s1, [#allocation4]
    $region13: #{tpu_custom_call.1} parent=1 // pred_fallthru
      _
    // Predicated region
    $region14: #{tpu_custom_call.1} parent=1 // pred_check
      _
    $region15: #{tpu_custom_call.1} parent=1 // pred_check_branch
      %36 = sbr.rel (0) target = $region17
    $region16: #{tpu_custom_call.1} parent=1 // pred_region
      %37 = dma.done [#allocation4], 256
    $region17: #{tpu_custom_call.1} parent=1 // pred_fallthru
      _
    %38 = vsyncpa [#allocation3], 1
    %39 = vsyncpa [#allocation4], 1

</llo_original>
